<compile_context>
chip_gen: v7x
topology: tpu7x:2x2x1
jax: 0.10.0
libtpu: 0.0.40
codegen_flags: <defaults>
</compile_context>

<pallas_src>
import functools

import jax
import jax.numpy as jnp
from jax.experimental import pallas as pl
from jax.experimental.pallas import tpu as pltpu

EPS = 1e-5

# Row layout of the packed per-feature vector slab (shape [8, Dmax], f32).
_ROW_BBB, _ROW_G1, _ROW_BE1, _ROW_G2, _ROW_BE2, _ROW_G3, _ROW_BE3, _ROW_PAD = range(8)


def _bn_train(x, gamma, beta):
    # torch.nn.BatchNorm1d (training mode): batch statistics, biased variance.
    mu = jnp.mean(x, axis=0, keepdims=True)
    var = jnp.mean(jnp.square(x - mu), axis=0, keepdims=True)
    return (x - mu) * jax.lax.rsqrt(var + EPS) * gamma + beta


def _simsiam_fused_kernel(
    pooled_ref,   # [1, B, C]    f32   GAP'd input for this branch
    wbb_ref,      # [1, C, F]    bf16  backbone linear weight
    w1_ref,       # [1, F, H]    bf16  projection layer-1 weight
    w2_ref,       # [1, H, H]    bf16  projection layer-2 weight
    w3_ref,       # [1, H, O]    bf16  projection layer-3 weight
    vec_ref,      # [1, 8, Dmax] f32   packed bbb / gamma / beta rows
    z_ref,        # [1, B, O]    f32   out: projection z
    f_ref,        # [1, B, F]    f32   out: features f
    *, C, F, H, O,
):
    vecs = vec_ref[0]                         # [8, Dmax] f32
    bbb = vecs[_ROW_BBB:_ROW_BBB + 1, :F]     # [1, F]
    g1, be1 = vecs[_ROW_G1:_ROW_G1 + 1, :H], vecs[_ROW_BE1:_ROW_BE1 + 1, :H]
    g2, be2 = vecs[_ROW_G2:_ROW_G2 + 1, :H], vecs[_ROW_BE2:_ROW_BE2 + 1, :H]
    g3, be3 = vecs[_ROW_G3:_ROW_G3 + 1, :O], vecs[_ROW_BE3:_ROW_BE3 + 1, :O]

    pooled = pooled_ref[0]                    # [B, C] f32

    # --- backbone head: f = pooled @ Wbb + bbb ------------------------------
    if C < 32:
        # Tiny contraction: a padded MXU pass would be almost all zeros; do a
        # VPU broadcast-multiply-accumulate in f32 instead (static unroll).
        wbb = wbb_ref[0].astype(jnp.float32)  # [C, F]
        f = bbb
        for c in range(C):
            f = f + pooled[:, c:c + 1] * wbb[c:c + 1, :]
    else:
        f = jnp.dot(pooled.astype(jnp.bfloat16), wbb_ref[0],
                    preferred_element_type=jnp.float32) + bbb
    f_ref[0] = f.astype(f_ref.dtype)

    # --- projection MLP (biases dropped: cancelled by BatchNorm) ------------
    h1 = jnp.dot(f.astype(jnp.bfloat16), w1_ref[0],
                 preferred_element_type=jnp.float32)
    h1 = jnp.maximum(_bn_train(h1, g1, be1), 0.0)

    h2 = jnp.dot(h1.astype(jnp.bfloat16), w2_ref[0],
                 preferred_element_type=jnp.float32)
    h2 = jnp.maximum(_bn_train(h2, g2, be2), 0.0)

    z = jnp.dot(h2.astype(jnp.bfloat16), w3_ref[0],
                preferred_element_type=jnp.float32)
    z_ref[0] = _bn_train(z, g3, be3).astype(z_ref.dtype)


def _pack_vectors(p, F, H, O, dmax):
    """Pack all per-feature [1, D] vectors of one branch into an (8, Dmax) slab."""
    def row(v, d):
        r = jnp.zeros((dmax,), jnp.float32)
        return r.at[:d].set(v.reshape(-1).astype(jnp.float32))
    return jnp.stack([
        row(p["bbb"], F),
        row(p["g1"], H), row(p["be1"], H),
        row(p["g2"], H), row(p["be2"], H),
        row(p["g3"], O), row(p["be3"], O),
        jnp.zeros((dmax,), jnp.float32),
    ])                                                       # [8, Dmax]


def _simsiam_branches(pooled_list, params_list):
    """Run n SimSiam branches fused into one pallas_call with grid=(n,)."""
    n = len(pooled_list)
    B, C = pooled_list[0].shape
    F = params_list[0]["wbb"].shape[1]
    H = params_list[0]["w1"].shape[1]
    O = params_list[0]["w3"].shape[1]
    dmax = max(F, H, O)

    bf16 = jnp.bfloat16
    pooled = jnp.stack([p.astype(jnp.float32) for p in pooled_list])          # [n,B,C]
    wbb = jnp.stack([p["wbb"].astype(bf16) for p in params_list])             # [n,C,F]
    w1 = jnp.stack([p["w1"].astype(bf16) for p in params_list])               # [n,F,H]
    w2 = jnp.stack([p["w2"].astype(bf16) for p in params_list])               # [n,H,H]
    w3 = jnp.stack([p["w3"].astype(bf16) for p in params_list])               # [n,H,O]
    vecs = jnp.stack([_pack_vectors(p, F, H, O, dmax) for p in params_list])  # [n,8,Dmax]

    kernel = functools.partial(_simsiam_fused_kernel, C=C, F=F, H=H, O=O)

    flops = 2 * n * B * (C * F + F * H + H * H + H * O)
    transcendentals = n * (2 * H + O)                      # rsqrt in the 3 BN layers
    bytes_accessed = (pooled.size * 4 + vecs.size * 4
                      + (wbb.size + w1.size + w2.size + w3.size) * 2
                      + n * B * (O + F) * 4)

    branch_spec = lambda shape: pl.BlockSpec(shape, lambda b: (b, 0, 0))

    z_all, f_all = pl.pallas_call(
        kernel,
        out_shape=(
            jax.ShapeDtypeStruct((n, B, O), jnp.float32),
            jax.ShapeDtypeStruct((n, B, F), jnp.float32),
        ),
        grid=(n,),
        in_specs=[
            branch_spec((1, B, C)),
            branch_spec((1, C, F)),
            branch_spec((1, F, H)),
            branch_spec((1, H, H)),
            branch_spec((1, H, O)),
            branch_spec((1, 8, dmax)),
        ],
        out_specs=(
            branch_spec((1, B, O)),
            branch_spec((1, B, F)),
        ),
        compiler_params=pltpu.CompilerParams(
            dimension_semantics=("parallel",),
            vmem_limit_bytes=48 * 1024 * 1024,
        ),
        cost_estimate=pl.CostEstimate(
            flops=int(flops),
            transcendentals=int(transcendentals),
            bytes_accessed=int(bytes_accessed),
        ),
    )(pooled, wbb, w1, w2, w3, vecs)

    return tuple(z_all[i] for i in range(n)), tuple(f_all[i] for i in range(n))


@functools.partial(jax.jit, static_argnames=("return_features",))
def simsiam_forward(x0, x1, params1, params2, return_features=False):
    # glue: global average pool over spatial dims of NCHW input -> [B, C]
    pooled0 = jnp.mean(x0, axis=(2, 3))
    if x1 is None:
        (z0,), (f0,) = _simsiam_branches([pooled0], [params1])
        return (z0, f0) if return_features else z0
    pooled1 = jnp.mean(x1, axis=(2, 3))
    (z0, z1), (f0, f1) = _simsiam_branches([pooled0, pooled1], [params1, params2])
    out0 = (z0, f0) if return_features else z0
    out1 = (z1, f1) if return_features else z1
    return out0, out1


def _init_branch_params(key, c, num_ftrs, h_dims, out_dims):
    ks = jax.random.split(key, 6)
    s = 0.05

    def lin(k, din, dout):
        kw, kb = jax.random.split(k)
        w = jax.random.normal(kw, (din, dout), jnp.float32) * s
        b = jax.random.normal(kb, (1, dout), jnp.float32) * s
        return w, b

    def bn(k, d):
        kg, kb = jax.random.split(k)
        g = 1.0 + 0.1 * jax.random.normal(kg, (1, d), jnp.float32)
        be = 0.1 * jax.random.normal(kb, (1, d), jnp.float32)
        return g, be

    wbb, bbb = lin(ks[0], c, num_ftrs)
    w1, b1 = lin(ks[1], num_ftrs, h_dims)
    w2, b2 = lin(ks[2], h_dims, h_dims)
    w3, b3 = lin(ks[3], h_dims, out_dims)
    g1, be1 = bn(ks[4], h_dims)
    g2, be2 = bn(ks[5], h_dims)
    g3, be3 = bn(jax.random.fold_in(key, 7), out_dims)
    return dict(
        wbb=wbb, bbb=bbb,
        w1=w1, b1=b1, g1=g1, be1=be1,
        w2=w2, b2=b2, g2=g2, be2=be2,
        w3=w3, b3=b3, g3=g3, be3=be3,
    )


def _reference_branch(pooled, p):
    """PyTorch-faithful reference (biases included on every Linear).

    Weights are quantized to bf16 and matmul inputs cast to bf16 with f32
    accumulation, mirroring the kernel's storage/MXU precision; BN in f32.
    """
    dot = lambda a, w: jnp.dot(a.astype(jnp.bfloat16), w.astype(jnp.bfloat16),
                               preferred_element_type=jnp.float32)
    wbb_q = p["wbb"].astype(jnp.bfloat16).astype(jnp.float32)
    f = (pooled[:, :, None] * wbb_q[None, :, :]).sum(axis=1) + p["bbb"]
    h1 = jnp.maximum(_bn_train(dot(f, p["w1"]) + p["b1"], p["g1"], p["be1"]), 0.0)
    h2 = jnp.maximum(_bn_train(dot(h1, p["w2"]) + p["b2"], p["g2"], p["be2"]), 0.0)
    z = _bn_train(dot(h2, p["w3"]) + p["b3"], p["g3"], p["be3"])
    return z, f


if __name__ == "__main__":
    # small shapes: batch=8, channels=4, spatial=8, num_ftrs=hidden=out=128
    B, C, H, W = 8, 4, 8, 8
    NUM_FTRS, PROJ_HIDDEN, OUT_DIM = 128, 128, 128

    key = jax.random.PRNGKey(0)
    kx0, kx1, kp1, kp2 = jax.random.split(key, 4)
    x0 = jax.random.normal(kx0, (B, C, H, W), jnp.float32)
    x1 = jax.random.normal(kx1, (B, C, H, W), jnp.float32)

    params1 = _init_branch_params(kp1, C, NUM_FTRS, PROJ_HIDDEN, OUT_DIM)
    params2 = _init_branch_params(kp2, C, NUM_FTRS, PROJ_HIDDEN, OUT_DIM)

    (z0, f0), (z1, f1) = simsiam_forward(x0, x1, params1, params2, return_features=True)
    jax.block_until_ready((z0, f0, z1, f1))

    # correctness vs. PyTorch-faithful reference (bias-before-BN included there;
    # z tolerance accounts for bf16 re-rounding at the activation cast points).
    rz0, rf0 = _reference_branch(jnp.mean(x0, axis=(2, 3)), params1)
    rz1, rf1 = _reference_branch(jnp.mean(x1, axis=(2, 3)), params2)
    assert z0.shape == (B, OUT_DIM) and z1.shape == (B, OUT_DIM)
    assert f0.shape == (B, NUM_FTRS) and f1.shape == (B, NUM_FTRS)
    assert jnp.allclose(f0, rf0, atol=1e-4, rtol=1e-4)
    assert jnp.allclose(f1, rf1, atol=1e-4, rtol=1e-4)
    assert jnp.allclose(z0, rz0, atol=1e-2, rtol=1e-2)
    assert jnp.allclose(z1, rz1, atol=1e-2, rtol=1e-2)

    # single-view call path (x1=None), as in the PyTorch forward signature
    z_only = simsiam_forward(x0, None, params1, params2)
    jax.block_until_ready(z_only)
    assert jnp.allclose(z_only, z0, atol=1e-2, rtol=1e-2)

    print("KERNEL_OK")
</pallas_src>

<mosaic_0001>
module attributes {stable_mosaic.version = 11 : i64} {
  func.func @_simsiam_fused_kernel(%arg0: i32, %arg1: memref<1x8x4xf32, #tpu.memory_space<vmem>>, %arg2: memref<1x4x128xbf16, #tpu.memory_space<vmem>>, %arg3: memref<1x128x128xbf16, #tpu.memory_space<vmem>>, %arg4: memref<1x128x128xbf16, #tpu.memory_space<vmem>>, %arg5: memref<1x128x128xbf16, #tpu.memory_space<vmem>>, %arg6: memref<1x8x128xf32, #tpu.memory_space<vmem>>, %arg7: memref<1x8x128xf32, #tpu.memory_space<vmem>>, %arg8: memref<1x8x128xf32, #tpu.memory_space<vmem>>) attributes {dimension_semantics = [#tpu.dimension_semantics<parallel>], iteration_bounds = array<i64: 2>, scalar_prefetch = 0 : i64, scratch_operands = 0 : i64, tpu.core_type = #tpu.core_type<tc>, window_params = [{transform_indices = @transform_0, window_bounds = array<i64: 1, 8, 4>}, {transform_indices = @transform_1, window_bounds = array<i64: 1, 4, 128>}, {transform_indices = @transform_2, window_bounds = array<i64: 1, 128, 128>}, {transform_indices = @transform_3, window_bounds = array<i64: 1, 128, 128>}, {transform_indices = @transform_4, window_bounds = array<i64: 1, 128, 128>}, {transform_indices = @transform_5, window_bounds = array<i64: 1, 8, 128>}, {transform_indices = @transform_6, window_bounds = array<i64: 1, 8, 128>}, {transform_indices = @transform_7, window_bounds = array<i64: 1, 8, 128>}]} {
    %c0 = arith.constant 0 : index
    %c0_0 = arith.constant 0 : index
    %c0_1 = arith.constant 0 : index
    %0 = vector.load %arg6[%c0, %c0_0, %c0_1] : memref<1x8x128xf32, #tpu.memory_space<vmem>>, vector<1x8x128xf32>
    %1 = vector.shape_cast %0 : vector<1x8x128xf32> to vector<8x128xf32>
    %2 = vector.extract_strided_slice %1 {offsets = [0, 0], sizes = [1, 128], strides = [1, 1]} : vector<8x128xf32> to vector<1x128xf32>
    %3 = vector.extract_strided_slice %1 {offsets = [1, 0], sizes = [1, 128], strides = [1, 1]} : vector<8x128xf32> to vector<1x128xf32>
    %4 = vector.extract_strided_slice %1 {offsets = [2, 0], sizes = [1, 128], strides = [1, 1]} : vector<8x128xf32> to vector<1x128xf32>
    %5 = vector.extract_strided_slice %1 {offsets = [3, 0], sizes = [1, 128], strides = [1, 1]} : vector<8x128xf32> to vector<1x128xf32>
    %6 = vector.extract_strided_slice %1 {offsets = [4, 0], sizes = [1, 128], strides = [1, 1]} : vector<8x128xf32> to vector<1x128xf32>
    %7 = vector.extract_strided_slice %1 {offsets = [5, 0], sizes = [1, 128], strides = [1, 1]} : vector<8x128xf32> to vector<1x128xf32>
    %8 = vector.extract_strided_slice %1 {offsets = [6, 0], sizes = [1, 128], strides = [1, 1]} : vector<8x128xf32> to vector<1x128xf32>
    %c0_2 = arith.constant 0 : index
    %c0_3 = arith.constant 0 : index
    %c0_4 = arith.constant 0 : index
    %9 = vector.load %arg1[%c0_2, %c0_3, %c0_4] : memref<1x8x4xf32, #tpu.memory_space<vmem>>, vector<1x8x4xf32>
    %10 = vector.shape_cast %9 : vector<1x8x4xf32> to vector<8x4xf32>
    %c0_5 = arith.constant 0 : index
    %c0_6 = arith.constant 0 : index
    %c0_7 = arith.constant 0 : index
    %11 = vector.load %arg2[%c0_5, %c0_6, %c0_7] : memref<1x4x128xbf16, #tpu.memory_space<vmem>>, vector<1x4x128xbf16>
    %12 = vector.shape_cast %11 : vector<1x4x128xbf16> to vector<4x128xbf16>
    %13 = arith.extf %12 : vector<4x128xbf16> to vector<4x128xf32>
    %14 = vector.extract_strided_slice %10 {offsets = [0, 0], sizes = [8, 1], strides = [1, 1]} : vector<8x4xf32> to vector<8x1xf32>
    %15 = vector.extract_strided_slice %13 {offsets = [0, 0], sizes = [1, 128], strides = [1, 1]} : vector<4x128xf32> to vector<1x128xf32>
    %16 = vector.broadcast %14 : vector<8x1xf32> to vector<8x128xf32>
    %17 = vector.broadcast %15 : vector<1x128xf32> to vector<8x128xf32>
    %18 = arith.mulf %16, %17 : vector<8x128xf32>
    %19 = vector.broadcast %2 : vector<1x128xf32> to vector<8x128xf32>
    %20 = arith.addf %19, %18 : vector<8x128xf32>
    %21 = vector.extract_strided_slice %10 {offsets = [0, 1], sizes = [8, 1], strides = [1, 1]} : vector<8x4xf32> to vector<8x1xf32>
    %22 = vector.extract_strided_slice %13 {offsets = [1, 0], sizes = [1, 128], strides = [1, 1]} : vector<4x128xf32> to vector<1x128xf32>
    %23 = vector.broadcast %21 : vector<8x1xf32> to vector<8x128xf32>
    %24 = vector.broadcast %22 : vector<1x128xf32> to vector<8x128xf32>
    %25 = arith.mulf %23, %24 : vector<8x128xf32>
    %26 = arith.addf %20, %25 : vector<8x128xf32>
    %27 = vector.extract_strided_slice %10 {offsets = [0, 2], sizes = [8, 1], strides = [1, 1]} : vector<8x4xf32> to vector<8x1xf32>
    %28 = vector.extract_strided_slice %13 {offsets = [2, 0], sizes = [1, 128], strides = [1, 1]} : vector<4x128xf32> to vector<1x128xf32>
    %29 = vector.broadcast %27 : vector<8x1xf32> to vector<8x128xf32>
    %30 = vector.broadcast %28 : vector<1x128xf32> to vector<8x128xf32>
    %31 = arith.mulf %29, %30 : vector<8x128xf32>
    %32 = arith.addf %26, %31 : vector<8x128xf32>
    %33 = vector.extract_strided_slice %10 {offsets = [0, 3], sizes = [8, 1], strides = [1, 1]} : vector<8x4xf32> to vector<8x1xf32>
    %34 = vector.extract_strided_slice %13 {offsets = [3, 0], sizes = [1, 128], strides = [1, 1]} : vector<4x128xf32> to vector<1x128xf32>
    %35 = vector.broadcast %33 : vector<8x1xf32> to vector<8x128xf32>
    %36 = vector.broadcast %34 : vector<1x128xf32> to vector<8x128xf32>
    %37 = arith.mulf %35, %36 : vector<8x128xf32>
    %38 = arith.addf %32, %37 : vector<8x128xf32>
    %c0_8 = arith.constant 0 : index
    %c0_9 = arith.constant 0 : index
    %c0_10 = arith.constant 0 : index
    %39 = vector.load %arg8[%c0_8, %c0_9, %c0_10] : memref<1x8x128xf32, #tpu.memory_space<vmem>>, vector<1x8x128xf32>
    %40 = vector.shape_cast %39 : vector<1x8x128xf32> to vector<8x128xf32>
    %41 = vector.shape_cast %38 : vector<8x128xf32> to vector<1x8x128xf32>
    tpu.vector_store %arg8[%c0_8, %c0_9, %c0_10], %41 {strides = array<i32>} : memref<1x8x128xf32, #tpu.memory_space<vmem>>, vector<1x8x128xf32>,
    %42 = arith.truncf %38 : vector<8x128xf32> to vector<8x128xbf16>
    %c0_11 = arith.constant 0 : index
    %c0_12 = arith.constant 0 : index
    %c0_13 = arith.constant 0 : index
    %43 = vector.load %arg3[%c0_11, %c0_12, %c0_13] : memref<1x128x128xbf16, #tpu.memory_space<vmem>>, vector<1x128x128xbf16>
    %44 = vector.shape_cast %43 : vector<1x128x128xbf16> to vector<128x128xbf16>
    %cst = arith.constant dense<0.000000e+00> : vector<8x128xf32>
    %45 = tpu.matmul %42, %44, %cst {dimension_numbers = #tpu.dot_dimension_numbers<[1], [0], [0], [1], [0, 0, 1, 1], [], []>} : vector<8x128xbf16>, vector<128x128xbf16>, vector<8x128xf32> -> vector<8x128xf32>
    %cst_14 = arith.constant dense<0.000000e+00> : vector<128xf32>
    %46 = vector.multi_reduction <add>, %45, %cst_14 [0] : vector<8x128xf32> to vector<128xf32>
    %47 = vector.shape_cast %46 : vector<128xf32> to vector<1x128xf32>
    %cst_15 = arith.constant 8.000000e+00 : f32
    %48 = vector.broadcast %cst_15 : f32 to vector<1x128xf32>
    %49 = arith.divf %47, %48 : vector<1x128xf32>
    %50 = vector.broadcast %49 : vector<1x128xf32> to vector<8x128xf32>
    %51 = arith.subf %45, %50 : vector<8x128xf32>
    %52 = arith.mulf %51, %51 : vector<8x128xf32>
    %cst_16 = arith.constant dense<0.000000e+00> : vector<128xf32>
    %53 = vector.multi_reduction <add>, %52, %cst_16 [0] : vector<8x128xf32> to vector<128xf32>
    %54 = vector.shape_cast %53 : vector<128xf32> to vector<1x128xf32>
    %cst_17 = arith.constant 8.000000e+00 : f32
    %55 = vector.broadcast %cst_17 : f32 to vector<1x128xf32>
    %56 = arith.divf %54, %55 : vector<1x128xf32>
    %57 = vector.broadcast %49 : vector<1x128xf32> to vector<8x128xf32>
    %58 = arith.subf %45, %57 : vector<8x128xf32>
    %cst_18 = arith.constant 9.99999974E-6 : f32
    %59 = vector.broadcast %cst_18 : f32 to vector<1x128xf32>
    %60 = arith.addf %56, %59 : vector<1x128xf32>
    %61 = math.rsqrt %60 : vector<1x128xf32>
    %62 = vector.broadcast %61 : vector<1x128xf32> to vector<8x128xf32>
    %63 = arith.mulf %58, %62 : vector<8x128xf32>
    %64 = vector.broadcast %3 : vector<1x128xf32> to vector<8x128xf32>
    %65 = arith.mulf %63, %64 : vector<8x128xf32>
    %66 = vector.broadcast %4 : vector<1x128xf32> to vector<8x128xf32>
    %67 = arith.addf %65, %66 : vector<8x128xf32>
    %cst_19 = arith.constant 0.000000e+00 : f32
    %68 = vector.broadcast %cst_19 : f32 to vector<8x128xf32>
    %69 = arith.maximumf %67, %68 : vector<8x128xf32>
    %70 = arith.truncf %69 : vector<8x128xf32> to vector<8x128xbf16>
    %c0_20 = arith.constant 0 : index
    %c0_21 = arith.constant 0 : index
    %c0_22 = arith.constant 0 : index
    %71 = vector.load %arg4[%c0_20, %c0_21, %c0_22] : memref<1x128x128xbf16, #tpu.memory_space<vmem>>, vector<1x128x128xbf16>
    %72 = vector.shape_cast %71 : vector<1x128x128xbf16> to vector<128x128xbf16>
    %cst_23 = arith.constant dense<0.000000e+00> : vector<8x128xf32>
    %73 = tpu.matmul %70, %72, %cst_23 {dimension_numbers = #tpu.dot_dimension_numbers<[1], [0], [0], [1], [0, 0, 1, 1], [], []>} : vector<8x128xbf16>, vector<128x128xbf16>, vector<8x128xf32> -> vector<8x128xf32>
    %cst_24 = arith.constant dense<0.000000e+00> : vector<128xf32>
    %74 = vector.multi_reduction <add>, %73, %cst_24 [0] : vector<8x128xf32> to vector<128xf32>
    %75 = vector.shape_cast %74 : vector<128xf32> to vector<1x128xf32>
    %cst_25 = arith.constant 8.000000e+00 : f32
    %76 = vector.broadcast %cst_25 : f32 to vector<1x128xf32>
    %77 = arith.divf %75, %76 : vector<1x128xf32>
    %78 = vector.broadcast %77 : vector<1x128xf32> to vector<8x128xf32>
    %79 = arith.subf %73, %78 : vector<8x128xf32>
    %80 = arith.mulf %79, %79 : vector<8x128xf32>
    %cst_26 = arith.constant dense<0.000000e+00> : vector<128xf32>
    %81 = vector.multi_reduction <add>, %80, %cst_26 [0] : vector<8x128xf32> to vector<128xf32>
    %82 = vector.shape_cast %81 : vector<128xf32> to vector<1x128xf32>
    %cst_27 = arith.constant 8.000000e+00 : f32
    %83 = vector.broadcast %cst_27 : f32 to vector<1x128xf32>
    %84 = arith.divf %82, %83 : vector<1x128xf32>
    %85 = vector.broadcast %77 : vector<1x128xf32> to vector<8x128xf32>
    %86 = arith.subf %73, %85 : vector<8x128xf32>
    %cst_28 = arith.constant 9.99999974E-6 : f32
    %87 = vector.broadcast %cst_28 : f32 to vector<1x128xf32>
    %88 = arith.addf %84, %87 : vector<1x128xf32>
    %89 = math.rsqrt %88 : vector<1x128xf32>
    %90 = vector.broadcast %89 : vector<1x128xf32> to vector<8x128xf32>
    %91 = arith.mulf %86, %90 : vector<8x128xf32>
    %92 = vector.broadcast %5 : vector<1x128xf32> to vector<8x128xf32>
    %93 = arith.mulf %91, %92 : vector<8x128xf32>
    %94 = vector.broadcast %6 : vector<1x128xf32> to vector<8x128xf32>
    %95 = arith.addf %93, %94 : vector<8x128xf32>
    %cst_29 = arith.constant 0.000000e+00 : f32
    %96 = vector.broadcast %cst_29 : f32 to vector<8x128xf32>
    %97 = arith.maximumf %95, %96 : vector<8x128xf32>
    %98 = arith.truncf %97 : vector<8x128xf32> to vector<8x128xbf16>
    %c0_30 = arith.constant 0 : index
    %c0_31 = arith.constant 0 : index
    %c0_32 = arith.constant 0 : index
    %99 = vector.load %arg5[%c0_30, %c0_31, %c0_32] : memref<1x128x128xbf16, #tpu.memory_space<vmem>>, vector<1x128x128xbf16>
    %100 = vector.shape_cast %99 : vector<1x128x128xbf16> to vector<128x128xbf16>
    %cst_33 = arith.constant dense<0.000000e+00> : vector<8x128xf32>
    %101 = tpu.matmul %98, %100, %cst_33 {dimension_numbers = #tpu.dot_dimension_numbers<[1], [0], [0], [1], [0, 0, 1, 1], [], []>} : vector<8x128xbf16>, vector<128x128xbf16>, vector<8x128xf32> -> vector<8x128xf32>
    %cst_34 = arith.constant dense<0.000000e+00> : vector<128xf32>
    %102 = vector.multi_reduction <add>, %101, %cst_34 [0] : vector<8x128xf32> to vector<128xf32>
    %103 = vector.shape_cast %102 : vector<128xf32> to vector<1x128xf32>
    %cst_35 = arith.constant 8.000000e+00 : f32
    %104 = vector.broadcast %cst_35 : f32 to vector<1x128xf32>
    %105 = arith.divf %103, %104 : vector<1x128xf32>
    %106 = vector.broadcast %105 : vector<1x128xf32> to vector<8x128xf32>
    %107 = arith.subf %101, %106 : vector<8x128xf32>
    %108 = arith.mulf %107, %107 : vector<8x128xf32>
    %cst_36 = arith.constant dense<0.000000e+00> : vector<128xf32>
    %109 = vector.multi_reduction <add>, %108, %cst_36 [0] : vector<8x128xf32> to vector<128xf32>
    %110 = vector.shape_cast %109 : vector<128xf32> to vector<1x128xf32>
    %cst_37 = arith.constant 8.000000e+00 : f32
    %111 = vector.broadcast %cst_37 : f32 to vector<1x128xf32>
    %112 = arith.divf %110, %111 : vector<1x128xf32>
    %113 = vector.broadcast %105 : vector<1x128xf32> to vector<8x128xf32>
    %114 = arith.subf %101, %113 : vector<8x128xf32>
    %cst_38 = arith.constant 9.99999974E-6 : f32
    %115 = vector.broadcast %cst_38 : f32 to vector<1x128xf32>
    %116 = arith.addf %112, %115 : vector<1x128xf32>
    %117 = math.rsqrt %116 : vector<1x128xf32>
    %118 = vector.broadcast %117 : vector<1x128xf32> to vector<8x128xf32>
    %119 = arith.mulf %114, %118 : vector<8x128xf32>
    %120 = vector.broadcast %7 : vector<1x128xf32> to vector<8x128xf32>
    %121 = arith.mulf %119, %120 : vector<8x128xf32>
    %122 = vector.broadcast %8 : vector<1x128xf32> to vector<8x128xf32>
    %123 = arith.addf %121, %122 : vector<8x128xf32>
    %c0_39 = arith.constant 0 : index
    %c0_40 = arith.constant 0 : index
    %c0_41 = arith.constant 0 : index
    %124 = vector.load %arg7[%c0_39, %c0_40, %c0_41] : memref<1x8x128xf32, #tpu.memory_space<vmem>>, vector<1x8x128xf32>
    %125 = vector.shape_cast %124 : vector<1x8x128xf32> to vector<8x128xf32>
    %126 = vector.shape_cast %123 : vector<8x128xf32> to vector<1x8x128xf32>
    tpu.vector_store %arg7[%c0_39, %c0_40, %c0_41], %126 {strides = array<i32>} : memref<1x8x128xf32, #tpu.memory_space<vmem>>, vector<1x8x128xf32>,
    return
  }
  func.func @transform_0(%arg0: i32) -> (i32, i32, i32) {
    %c0_i32 = arith.constant 0 : i32
    %c0_i32_0 = arith.constant 0 : i32
    %c0_i32_1 = arith.constant 0 : i32
    return %arg0, %c0_i32, %c0_i32_0 : i32, i32, i32
  }
  func.func @transform_1(%arg0: i32) -> (i32, i32, i32) {
    %c0_i32 = arith.constant 0 : i32
    %c0_i32_0 = arith.constant 0 : i32
    %c0_i32_1 = arith.constant 0 : i32
    return %arg0, %c0_i32, %c0_i32_0 : i32, i32, i32
  }
  func.func @transform_2(%arg0: i32) -> (i32, i32, i32) {
    %c0_i32 = arith.constant 0 : i32
    %c0_i32_0 = arith.constant 0 : i32
    %c0_i32_1 = arith.constant 0 : i32
    return %arg0, %c0_i32, %c0_i32_0 : i32, i32, i32
  }
  func.func @transform_3(%arg0: i32) -> (i32, i32, i32) {
    %c0_i32 = arith.constant 0 : i32
    %c0_i32_0 = arith.constant 0 : i32
    %c0_i32_1 = arith.constant 0 : i32
    return %arg0, %c0_i32, %c0_i32_0 : i32, i32, i32
  }
  func.func @transform_4(%arg0: i32) -> (i32, i32, i32) {
    %c0_i32 = arith.constant 0 : i32
    %c0_i32_0 = arith.constant 0 : i32
    %c0_i32_1 = arith.constant 0 : i32
    return %arg0, %c0_i32, %c0_i32_0 : i32, i32, i32
  }
  func.func @transform_5(%arg0: i32) -> (i32, i32, i32) {
    %c0_i32 = arith.constant 0 : i32
    %c0_i32_0 = arith.constant 0 : i32
    %c0_i32_1 = arith.constant 0 : i32
    return %arg0, %c0_i32, %c0_i32_0 : i32, i32, i32
  }
  func.func @transform_6(%arg0: i32) -> (i32, i32, i32) {
    %c0_i32 = arith.constant 0 : i32
    %c0_i32_0 = arith.constant 0 : i32
    %c0_i32_1 = arith.constant 0 : i32
    return %arg0, %c0_i32, %c0_i32_0 : i32, i32, i32
  }
  func.func @transform_7(%arg0: i32) -> (i32, i32, i32) {
    %c0_i32 = arith.constant 0 : i32
    %c0_i32_0 = arith.constant 0 : i32
    %c0_i32_1 = arith.constant 0 : i32
    return %arg0, %c0_i32, %c0_i32_0 : i32, i32, i32
  }
}

</mosaic_0001>

<llo_original>
// kernel: simsiam_forward.1
$region0: #{simsiam_forward.1}
  #allocation0 [shape = 'u32[]', space=smem, size = 0x4, offset = 0x4, fixed_abs, tag = 'smem constant byte address 0x4 - core index']
  #allocation1 [shape = 'u32[144,128]{1,0:T(1,128)}', space=vmem, size = 0x12000, scoped, tag = 'internal scratch']
  %s0 = inlined_call_operand.vmem [shape: f32[2,8,4], index: 0, kind: input, shape index: {}]
  %s1 = inlined_call_operand.vmem [shape: bf16[2,4,128], index: 1, kind: input, shape index: {}]
  %s2 = inlined_call_operand.vmem [shape: bf16[2,128,128], index: 2, kind: input, shape index: {}]
  %s3 = inlined_call_operand.vmem [shape: bf16[2,128,128], index: 3, kind: input, shape index: {}]
  %s4 = inlined_call_operand.vmem [shape: bf16[2,128,128], index: 4, kind: input, shape index: {}]
  %s5 = inlined_call_operand.vmem [shape: f32[2,8,128], index: 5, kind: input, shape index: {}]
  %s6 = inlined_call_operand.vmem [shape: f32[2,8,128], index: 6, kind: output, shape index: {0}]
  %s7 = inlined_call_operand.vmem [shape: f32[2,8,128], index: 7, kind: output, shape index: {1}]
  %8 = xla_tuple %s6, %s7
  %s9 = sld [smem:[#allocation0]]
  $region65: #{simsiam_forward.1} parent=0
    _
  %s11 = ssub.s32 1, %s9
  %s12 = scalar_select 0, %s11, %s9
  loop: start=0, step=1, limit=4
  $region2: #{simsiam_forward.1} parent=0 // loop_pre_header
    _
  $region3: #{simsiam_forward.1} parent=0 // loop_header
    %s14 = sphi 0, %s18
    %p15 = scmp.ge.s32.totalorder %s14, 4
    %s24 = sphi 0, %s26
    %s27 = sphi 0, %s24
    %s28 = sphi 0, %s27
    %s44 = sphi 0, %s28
    %s50 = sphi 0, %s52
    %s53 = sphi 0, %s50
    %s54 = sphi 0, %s53
    %s70 = sphi 0, %s54
    %s76 = sphi 0, %s78
    %s79 = sphi 0, %s76
    %s80 = sphi 0, %s79
    %s96 = sphi 0, %s80
    %s102 = sphi 0, %s104
    %s105 = sphi 0, %s102
    %s106 = sphi 0, %s105
    %s122 = sphi 0, %s106
    %s128 = sphi 0, %s130
    %s131 = sphi 0, %s128
    %s132 = sphi 0, %s131
    %s148 = sphi 0, %s132
    %s154 = sphi 0, %s156
    %s157 = sphi 0, %s154
    %s158 = sphi 0, %s157
    %s174 = sphi 0, %s158
    %s180 = sphi 0, %s182
    %s183 = sphi 0, %s180
    %s184 = sphi 0, %s183
    %s200 = sphi 0, %s184
    %s206 = sphi 0, %s208
    %s209 = sphi 0, %s206
    %s210 = sphi 0, %s209
    %s226 = sphi 0, %s210
  $region4: #{simsiam_forward.1} parent=0 // loop_header_branch
    %17 = sbr.rel (%p15) target = $region8
  $region5: #{simsiam_forward.1} parent=0 // loop_body
    %s19 = ssub.s32 %s14, 1
    %s20 = ssub.s32 %s14, 2
    %s21 = sadd.s32 %s14, 1
    %s22 = ssub.s32 %s14, %s21
    %p23 = scmp.eq.s32.totalorder %s22, 0
    %s25 = sadd.s32 %s24, 1
    %s26 = scalar_select %p23, %s24, %s25
    %p29 = pneg %p23
    %p30 = scmp.eq.s32.totalorder %s14, 1
    %p31 = por %p29, %p30
    %p32 = scmp.ne.s32.totalorder %s24, %s27
    %p33 = scmp.eq.s32.totalorder %s14, 0
    %p34 = por %p32, %p33
    %p35 = scmp.ne.s32.totalorder %s24, %s27
    %p36 = scmp.eq.s32.totalorder %s19, 1
    %p37 = por %p35, %p36
    %p38 = scmp.ne.s32.totalorder %s27, %s28
    %p39 = scmp.eq.s32.totalorder %s19, 0
    %p40 = por %p38, %p39
    %p41 = scmp.ne.s32.totalorder %s27, %s28
    %p42 = scmp.eq.s32.totalorder %s20, 1
    %p43 = por %p41, %p42
    %p45 = scmp.ne.s32.totalorder %s28, %s44
    %p46 = scmp.eq.s32.totalorder %s20, 0
    %p47 = por %p45, %p46
    %s48 = ssub.s32 %s14, %s21
    %p49 = scmp.eq.s32.totalorder %s48, 0
    %s51 = sadd.s32 %s50, 1
    %s52 = scalar_select %p49, %s50, %s51
    %p55 = pneg %p49
    %p56 = scmp.eq.s32.totalorder %s14, 1
    %p57 = por %p55, %p56
    %p58 = scmp.ne.s32.totalorder %s50, %s53
    %p59 = scmp.eq.s32.totalorder %s14, 0
    %p60 = por %p58, %p59
    %p61 = scmp.ne.s32.totalorder %s50, %s53
    %p62 = scmp.eq.s32.totalorder %s19, 1
    %p63 = por %p61, %p62
    %p64 = scmp.ne.s32.totalorder %s53, %s54
    %p65 = scmp.eq.s32.totalorder %s19, 0
    %p66 = por %p64, %p65
    %p67 = scmp.ne.s32.totalorder %s53, %s54
    %p68 = scmp.eq.s32.totalorder %s20, 1
    %p69 = por %p67, %p68
    %p71 = scmp.ne.s32.totalorder %s54, %s70
    %p72 = scmp.eq.s32.totalorder %s20, 0
    %p73 = por %p71, %p72
    %s74 = ssub.s32 %s14, %s21
    %p75 = scmp.eq.s32.totalorder %s74, 0
    %s77 = sadd.s32 %s76, 1
    %s78 = scalar_select %p75, %s76, %s77
    %p81 = pneg %p75
    %p82 = scmp.eq.s32.totalorder %s14, 1
    %p83 = por %p81, %p82
    %p84 = scmp.ne.s32.totalorder %s76, %s79
    %p85 = scmp.eq.s32.totalorder %s14, 0
    %p86 = por %p84, %p85
    %p87 = scmp.ne.s32.totalorder %s76, %s79
    %p88 = scmp.eq.s32.totalorder %s19, 1
    %p89 = por %p87, %p88
    %p90 = scmp.ne.s32.totalorder %s79, %s80
    %p91 = scmp.eq.s32.totalorder %s19, 0
    %p92 = por %p90, %p91
    %p93 = scmp.ne.s32.totalorder %s79, %s80
    %p94 = scmp.eq.s32.totalorder %s20, 1
    %p95 = por %p93, %p94
    %p97 = scmp.ne.s32.totalorder %s80, %s96
    %p98 = scmp.eq.s32.totalorder %s20, 0
    %p99 = por %p97, %p98
    %s100 = ssub.s32 %s14, %s21
    %p101 = scmp.eq.s32.totalorder %s100, 0
    %s103 = sadd.s32 %s102, 1
    %s104 = scalar_select %p101, %s102, %s103
    %p107 = pneg %p101
    %p108 = scmp.eq.s32.totalorder %s14, 1
    %p109 = por %p107, %p108
    %p110 = scmp.ne.s32.totalorder %s102, %s105
    %p111 = scmp.eq.s32.totalorder %s14, 0
    %p112 = por %p110, %p111
    %p113 = scmp.ne.s32.totalorder %s102, %s105
    %p114 = scmp.eq.s32.totalorder %s19, 1
    %p115 = por %p113, %p114
    %p116 = scmp.ne.s32.totalorder %s105, %s106
    %p117 = scmp.eq.s32.totalorder %s19, 0
    %p118 = por %p116, %p117
    %p119 = scmp.ne.s32.totalorder %s105, %s106
    %p120 = scmp.eq.s32.totalorder %s20, 1
    %p121 = por %p119, %p120
    %p123 = scmp.ne.s32.totalorder %s106, %s122
    %p124 = scmp.eq.s32.totalorder %s20, 0
    %p125 = por %p123, %p124
    %s126 = ssub.s32 %s14, %s21
    %p127 = scmp.eq.s32.totalorder %s126, 0
    %s129 = sadd.s32 %s128, 1
    %s130 = scalar_select %p127, %s128, %s129
    %p133 = pneg %p127
    %p134 = scmp.eq.s32.totalorder %s14, 1
    %p135 = por %p133, %p134
    %p136 = scmp.ne.s32.totalorder %s128, %s131
    %p137 = scmp.eq.s32.totalorder %s14, 0
    %p138 = por %p136, %p137
    %p139 = scmp.ne.s32.totalorder %s128, %s131
    %p140 = scmp.eq.s32.totalorder %s19, 1
    %p141 = por %p139, %p140
    %p142 = scmp.ne.s32.totalorder %s131, %s132
    %p143 = scmp.eq.s32.totalorder %s19, 0
    %p144 = por %p142, %p143
    %p145 = scmp.ne.s32.totalorder %s131, %s132
    %p146 = scmp.eq.s32.totalorder %s20, 1
    %p147 = por %p145, %p146
    %p149 = scmp.ne.s32.totalorder %s132, %s148
    %p150 = scmp.eq.s32.totalorder %s20, 0
    %p151 = por %p149, %p150
    %s152 = ssub.s32 %s14, %s21
    %p153 = scmp.eq.s32.totalorder %s152, 0
    %s155 = sadd.s32 %s154, 1
    %s156 = scalar_select %p153, %s154, %s155
    %p159 = pneg %p153
    %p160 = scmp.eq.s32.totalorder %s14, 1
    %p161 = por %p159, %p160
    %p162 = scmp.ne.s32.totalorder %s154, %s157
    %p163 = scmp.eq.s32.totalorder %s14, 0
    %p164 = por %p162, %p163
    %p165 = scmp.ne.s32.totalorder %s154, %s157
    %p166 = scmp.eq.s32.totalorder %s19, 1
    %p167 = por %p165, %p166
    %p168 = scmp.ne.s32.totalorder %s157, %s158
    %p169 = scmp.eq.s32.totalorder %s19, 0
    %p170 = por %p168, %p169
    %p171 = scmp.ne.s32.totalorder %s157, %s158
    %p172 = scmp.eq.s32.totalorder %s20, 1
    %p173 = por %p171, %p172
    %p175 = scmp.ne.s32.totalorder %s158, %s174
    %p176 = scmp.eq.s32.totalorder %s20, 0
    %p177 = por %p175, %p176
    %s178 = ssub.s32 %s14, %s21
    %p179 = scmp.eq.s32.totalorder %s178, 0
    %s181 = sadd.s32 %s180, 1
    %s182 = scalar_select %p179, %s180, %s181
    %p185 = pneg %p179
    %p186 = scmp.eq.s32.totalorder %s14, 1
    %p187 = por %p185, %p186
    %p188 = scmp.ne.s32.totalorder %s180, %s183
    %p189 = scmp.eq.s32.totalorder %s14, 0
    %p190 = por %p188, %p189
    %p191 = scmp.ne.s32.totalorder %s180, %s183
    %p192 = scmp.eq.s32.totalorder %s19, 1
    %p193 = por %p191, %p192
    %p194 = scmp.ne.s32.totalorder %s183, %s184
    %p195 = scmp.eq.s32.totalorder %s19, 0
    %p196 = por %p194, %p195
    %p197 = scmp.ne.s32.totalorder %s183, %s184
    %p198 = scmp.eq.s32.totalorder %s20, 1
    %p199 = por %p197, %p198
    %p201 = scmp.ne.s32.totalorder %s184, %s200
    %p202 = scmp.eq.s32.totalorder %s20, 0
    %p203 = por %p201, %p202
    %s204 = ssub.s32 %s14, %s21
    %p205 = scmp.eq.s32.totalorder %s204, 0
    %s207 = sadd.s32 %s206, 1
    %s208 = scalar_select %p205, %s206, %s207
    %p211 = pneg %p205
    %p212 = scmp.eq.s32.totalorder %s14, 1
    %p213 = por %p211, %p212
    %p214 = scmp.ne.s32.totalorder %s206, %s209
    %p215 = scmp.eq.s32.totalorder %s14, 0
    %p216 = por %p214, %p215
    %p217 = scmp.ne.s32.totalorder %s206, %s209
    %p218 = scmp.eq.s32.totalorder %s19, 1
    %p219 = por %p217, %p218
    %p220 = scmp.ne.s32.totalorder %s209, %s210
    %p221 = scmp.eq.s32.totalorder %s19, 0
    %p222 = por %p220, %p221
    %p223 = scmp.ne.s32.totalorder %s209, %s210
    %p224 = scmp.eq.s32.totalorder %s20, 1
    %p225 = por %p223, %p224
    %p227 = scmp.ne.s32.totalorder %s210, %s226
    %p228 = scmp.eq.s32.totalorder %s20, 0
    %p229 = por %p227, %p228
    %p230 = scmp.le.s32.totalorder 1, %s14
    %p231 = scmp.lt.s32.totalorder %s14, 3
    %p232 = pnand %p230, %p231
    %p233 = pneg %p232
    // Predicated region
    $region9: #{simsiam_forward.1} parent=5 // pred_check
      _
    $region10: #{simsiam_forward.1} parent=5 // pred_check_branch
      %235 = sbr.rel (%p232) target = $region12
    $region11: #{simsiam_forward.1} parent=5 // pred_region
      %s236 = ssub.s32 %s14, 1
    $region12: #{simsiam_forward.1} parent=5 // pred_fallthru
      _
    %p237 = scmp.lt.s32.totalorder %s14, 2
    // Predicated region
    $region13: #{simsiam_forward.1} parent=5 // pred_check
      %p238 = pneg %p237
    $region14: #{simsiam_forward.1} parent=5 // pred_check_branch
      %240 = sbr.rel (%p238) target = $region16
    $region15: #{simsiam_forward.1} parent=5 // pred_region
      // Predicated region
      $region17: #{simsiam_forward.1} parent=15 // pred_check
        %p241 = pneg %p34
      $region18: #{simsiam_forward.1} parent=15 // pred_check_branch
        %243 = sbr.rel (%p241) target = $region20
      $region19: #{simsiam_forward.1} parent=15 // pred_region
        %p244 = scmp.lt.s32.totalorder %s14, 1
        %s245 = scalar_select %p244, %s14, 1
        %s246 = smul.addr %s245, 8
        %s247 = scalar_lea.vmem %s0, %s246
      $region20: #{simsiam_forward.1} parent=15 // pred_fallthru
        _
      // Predicated region
      $region21: #{simsiam_forward.1} parent=15 // pred_check
        %p248 = pneg %p60
      $region22: #{simsiam_forward.1} parent=15 // pred_check_branch
        %250 = sbr.rel (%p248) target = $region24
      $region23: #{simsiam_forward.1} parent=15 // pred_region
        %p251 = scmp.lt.s32.totalorder %s14, 1
        %s252 = scalar_select %p251, %s14, 1
        %s253 = smul.addr %s252, 2
        %s254 = scalar_lea.vmem %s1, %s253
      $region24: #{simsiam_forward.1} parent=15 // pred_fallthru
        _
      // Predicated region
      $region25: #{simsiam_forward.1} parent=15 // pred_check
        %p255 = pneg %p86
      $region26: #{simsiam_forward.1} parent=15 // pred_check_branch
        %257 = sbr.rel (%p255) target = $region28
      $region27: #{simsiam_forward.1} parent=15 // pred_region
        %p258 = scmp.lt.s32.totalorder %s14, 1
        %s259 = scalar_select %p258, %s14, 1
        %s260 = smul.addr %s259, 16
        %s261 = smul.addr %s260, 4
        %s262 = scalar_lea.vmem %s2, %s261
      $region28: #{simsiam_forward.1} parent=15 // pred_fallthru
        _
      // Predicated region
      $region29: #{simsiam_forward.1} parent=15 // pred_check
        %p263 = pneg %p112
      $region30: #{simsiam_forward.1} parent=15 // pred_check_branch
        %265 = sbr.rel (%p263) target = $region32
      $region31: #{simsiam_forward.1} parent=15 // pred_region
        %p266 = scmp.lt.s32.totalorder %s14, 1
        %s267 = scalar_select %p266, %s14, 1
        %s268 = smul.addr %s267, 16
        %s269 = smul.addr %s268, 4
        %s270 = scalar_lea.vmem %s3, %s269
      $region32: #{simsiam_forward.1} parent=15 // pred_fallthru
        _
      // Predicated region
      $region33: #{simsiam_forward.1} parent=15 // pred_check
        %p271 = pneg %p138
      $region34: #{simsiam_forward.1} parent=15 // pred_check_branch
        %273 = sbr.rel (%p271) target = $region36
      $region35: #{simsiam_forward.1} parent=15 // pred_region
        %p274 = scmp.lt.s32.totalorder %s14, 1
        %s275 = scalar_select %p274, %s14, 1
        %s276 = smul.addr %s275, 16
        %s277 = smul.addr %s276, 4
        %s278 = scalar_lea.vmem %s4, %s277
      $region36: #{simsiam_forward.1} parent=15 // pred_fallthru
        _
      // Predicated region
      $region37: #{simsiam_forward.1} parent=15 // pred_check
        %p279 = pneg %p164
      $region38: #{simsiam_forward.1} parent=15 // pred_check_branch
        %281 = sbr.rel (%p279) target = $region40
      $region39: #{simsiam_forward.1} parent=15 // pred_region
        %p282 = scmp.lt.s32.totalorder %s14, 1
        %s283 = scalar_select %p282, %s14, 1
        %s284 = smul.addr %s283, 8
        %s285 = scalar_lea.vmem %s5, %s284
      $region40: #{simsiam_forward.1} parent=15 // pred_fallthru
        _
    $region16: #{simsiam_forward.1} parent=5 // pred_fallthru
      _
    %p286 = scmp.le.s32.totalorder 1, %s14
    %p287 = scmp.lt.s32.totalorder %s14, 3
    %p288 = pnand %p286, %p287
    %p289 = pneg %p288
    // Predicated region
    $region41: #{simsiam_forward.1} parent=5 // pred_check
      _
    $region42: #{simsiam_forward.1} parent=5 // pred_check_branch
      %291 = sbr.rel (%p288) target = $region44
    $region43: #{simsiam_forward.1} parent=5 // pred_region
      %s292 = ssub.s32 %s14, 1
      %p293 = scmp.lt.s32.totalorder %s19, 1
      %s294 = scalar_select %p293, %s19, 1
      %s295 = smul.addr %s294, 8
      %s296 = scalar_lea.vmem %s0, %s295
      %p297 = pneg %p40
      %p298 = pneg %p37
      %p299 = scmp.lt.s32.totalorder %s19, 1
      %s300 = scalar_select %p299, %s19, 1
      %s301 = smul.addr %s300, 2
      %s302 = scalar_lea.vmem %s1, %s301
      %p303 = pneg %p66
      %p304 = pneg %p63
      %p305 = scmp.lt.s32.totalorder %s19, 1
      %s306 = scalar_select %p305, %s19, 1
      %s307 = smul.addr %s306, 16
      %s308 = smul.addr %s307, 4
      %s309 = scalar_lea.vmem %s2, %s308
      %p310 = pneg %p92
      %p311 = pneg %p89
      %p312 = scmp.lt.s32.totalorder %s19, 1
      %s313 = scalar_select %p312, %s19, 1
      %s314 = smul.addr %s313, 16
      %s315 = smul.addr %s314, 4
      %s316 = scalar_lea.vmem %s3, %s315
      %p317 = pneg %p118
      %p318 = pneg %p115
      %p319 = scmp.lt.s32.totalorder %s19, 1
      %s320 = scalar_select %p319, %s19, 1
      %s321 = smul.addr %s320, 16
      %s322 = smul.addr %s321, 4
      %s323 = scalar_lea.vmem %s4, %s322
      %p324 = pneg %p144
      %p325 = pneg %p141
      %p326 = scmp.lt.s32.totalorder %s19, 1
      %s327 = scalar_select %p326, %s19, 1
      %s328 = smul.addr %s327, 8
      %s329 = scalar_lea.vmem %s5, %s328
      %p330 = pneg %p170
      %p331 = pneg %p167
      %p332 = pneg %p196
      %p333 = pneg %p193
      %p334 = scmp.lt.s32.totalorder %s19, 1
      %s335 = scalar_select %p334, %s19, 1
      %s336 = smul.addr %s335, 8
      %s337 = scalar_lea.vmem %s6, %s336
      %p338 = pneg %p222
      %p339 = pneg %p219
      %p340 = scmp.lt.s32.totalorder %s19, 1
      %s341 = scalar_select %p340, %s19, 1
      %s342 = smul.addr %s341, 8
      %s343 = scalar_lea.vmem %s7, %s342
      %p344 = scmp.lt.s32.totalorder %s19, 1
      %s345 = scalar_select %p344, %s19, 1
      %s346 = smul.addr %s345, 8
      %s347 = scalar_lea.vmem %s0, %s346
      %p348 = scmp.lt.s32.totalorder %s19, 1
      %s349 = scalar_select %p348, %s19, 1
      %s350 = smul.addr %s349, 2
      %s351 = scalar_lea.vmem %s1, %s350
      %p352 = scmp.lt.s32.totalorder %s19, 1
      %s353 = scalar_select %p352, %s19, 1
      %s354 = smul.addr %s353, 16
      %s355 = smul.addr %s354, 4
      %s356 = scalar_lea.vmem %s2, %s355
      %p357 = scmp.lt.s32.totalorder %s19, 1
      %s358 = scalar_select %p357, %s19, 1
      %s359 = smul.addr %s358, 16
      %s360 = smul.addr %s359, 4
      %s361 = scalar_lea.vmem %s3, %s360
      %p362 = scmp.lt.s32.totalorder %s19, 1
      %s363 = scalar_select %p362, %s19, 1
      %s364 = smul.addr %s363, 16
      %s365 = smul.addr %s364, 4
      %s366 = scalar_lea.vmem %s4, %s365
      %p367 = scmp.lt.s32.totalorder %s19, 1
      %s368 = scalar_select %p367, %s19, 1
      %s369 = smul.addr %s368, 8
      %s370 = scalar_lea.vmem %s5, %s369
      %p371 = scmp.lt.s32.totalorder %s19, 1
      %s372 = scalar_select %p371, %s19, 1
      %s373 = smul.addr %s372, 8
      %s374 = scalar_lea.vmem %s6, %s373
      %p375 = scmp.lt.s32.totalorder %s19, 1
      %s376 = scalar_select %p375, %s19, 1
      %s377 = smul.addr %s376, 8
      %s378 = scalar_lea.vmem %s7, %s377
      %v380 = vld [vmem:[%s370] sm:$0xff]
      %v381 = vld [vmem:[%s347] sm:$0xff]
      %v382 = vld [vmem:[%s351] sm:$0x3]
      %v383 = vunpack.c.l.bf16 %v382
      %385 = vset.pattern.permute.xlu0 0
      %386 = vperm.xlu0 %385, %v381
      %v387 = vpop.permute.xlu0 %386
      %v389 = vlaneseq
      %v390 = vshrl.u32 %v389, 7
      %v391 = vsub.s32 0, %v390
      %v392 = vrot.slane %v383, %v391
      %v393 = vmul.f32 %v387, %v392
      %v394 = vlaneseq
      %v395 = vshrl.u32 %v394, 7
      %v396 = vsub.s32 0, %v395
      %v397 = vrot.slane %v380, %v396
      %v398 = vadd.f32 %v397, %v393
      %399 = vset.pattern.permute.xlu0 1
      %400 = vperm.xlu0 %399, %v381
      %v401 = vpop.permute.xlu0 %400
      %v403 = vlaneseq
      %v404 = vshrl.u32 %v403, 7
      %v405 = vsub.s32 1, %v404
      %v406 = vrot.slane %v383, %v405
      %v407 = vmul.f32 %v401, %v406
      %v408 = vadd.f32 %v398, %v407
      %409 = vset.pattern.permute.xlu0 2
      %410 = vperm.xlu0 %409, %v381
      %v411 = vpop.permute.xlu0 %410
      %v413 = vlaneseq
      %v414 = vshrl.u32 %v413, 7
      %v415 = vsub.s32 2, %v414
      %v416 = vrot.slane %v383, %v415
      %v417 = vmul.f32 %v411, %v416
      %v418 = vadd.f32 %v408, %v417
      %419 = vset.pattern.permute.xlu0 3
      %420 = vperm.xlu0 %419, %v381
      %v421 = vpop.permute.xlu0 %420
      %v423 = vlaneseq
      %v424 = vshrl.u32 %v423, 7
      %v425 = vsub.s32 3, %v424
      %v426 = vrot.slane %v383, %v425
      %v427 = vmul.f32 %v421, %v426
      %v428 = vadd.f32 %v418, %v427
      %429 = vst [vmem:[%s378] sm:$0xff] %v428
      %v430 = vpack.c.bf16 %v428, %v428
      %v431 = vld [vmem:[%s356] sm:$0xf]
      %v432 = vld [vmem:[%s356 + $0x4] sm:$0xf]
      %v433 = vld [vmem:[%s356 + $0x8] sm:$0xf]
      %v434 = vld [vmem:[%s356 + $0xc] sm:$0xf]
      %v435 = vld [vmem:[%s356 + $0x10] sm:$0xf]
      %v436 = vld [vmem:[%s356 + $0x14] sm:$0xf]
      %v437 = vld [vmem:[%s356 + $0x18] sm:$0xf]
      %v438 = vld [vmem:[%s356 + $0x1c] sm:$0xf]
      %v439 = vld [vmem:[%s356 + $0x20] sm:$0xf]
      %v440 = vld [vmem:[%s356 + $0x24] sm:$0xf]
      %v441 = vld [vmem:[%s356 + $0x28] sm:$0xf]
      %v442 = vld [vmem:[%s356 + $0x2c] sm:$0xf]
      %v443 = vld [vmem:[%s356 + $0x30] sm:$0xf]
      %v444 = vld [vmem:[%s356 + $0x34] sm:$0xf]
      %v445 = vld [vmem:[%s356 + $0x38] sm:$0xf]
      %v446 = vld [vmem:[%s356 + $0x3c] sm:$0xf]
      %v463 = vunpack.c.l.b16 %v431
      %v464 = vunpack.c.l.b16 %v432
      %v465 = vunpack.c.l.b16 %v433
      %v466 = vunpack.c.l.b16 %v434
      %v467 = vunpack.c.l.b16 %v435
      %v468 = vunpack.c.l.b16 %v436
      %v469 = vunpack.c.l.b16 %v437
      %v470 = vunpack.c.l.b16 %v438
      %v471 = vunpack.c.l.b16 %v439
      %v472 = vunpack.c.l.b16 %v440
      %v473 = vunpack.c.l.b16 %v441
      %v474 = vunpack.c.l.b16 %v442
      %v475 = vunpack.c.l.b16 %v443
      %v476 = vunpack.c.l.b16 %v444
      %v477 = vunpack.c.l.b16 %v445
      %v478 = vunpack.c.l.b16 %v446
      %v479 = vpack.c.b16 %v464, %v463
      %v480 = vpack.c.b16 %v466, %v465
      %v481 = vpack.c.b16 %v468, %v467
      %v482 = vpack.c.b16 %v470, %v469
      %v483 = vpack.c.b16 %v472, %v471
      %v484 = vpack.c.b16 %v474, %v473
      %v485 = vpack.c.b16 %v476, %v475
      %v486 = vpack.c.b16 %v478, %v477
      %495 = vmatprep.subr.bf16.mxu0 0
      %496 = vmatpush1.bf16.msra.mxu0 %v479
      %497 = vmatprep.subr.bf16.mxu0 0
      %498 = vmatpush1.bf16.msra.mxu0 %v480
      %499 = vmatprep.subr.bf16.mxu0 0
      %500 = vmatpush1.bf16.msra.mxu0 %v481
      %501 = vmatprep.subr.bf16.mxu0 0
      %502 = vmatpush1.bf16.msra.mxu0 %v482
      %503 = vmatprep.subr.bf16.mxu0 0
      %504 = vmatpush1.bf16.msra.mxu0 %v483
      %505 = vmatprep.subr.bf16.mxu0 0
      %506 = vmatpush1.bf16.msra.mxu0 %v484
      %507 = vmatprep.subr.bf16.mxu0 0
      %508 = vmatpush1.bf16.msra.mxu0 %v485
      %509 = vmatprep.subr.bf16.mxu0 0
      %510 = vmatpush1.bf16.msra.mxu0 %v486
      %511 = vmatprep.subr.bf16.mxu0 0
      %512 = vmatpush1.bf16.msra.mxu0 0
      %513 = vmatprep.subr.bf16.mxu0 0
      %514 = vmatpush1.bf16.msra.mxu0 0
      %515 = vmatprep.subr.bf16.mxu0 0
      %516 = vmatpush1.bf16.msra.mxu0 0
      %517 = vmatprep.subr.bf16.mxu0 0
      %518 = vmatpush1.bf16.msra.mxu0 0
      %519 = vmatprep.subr.bf16.mxu0 0
      %520 = vmatpush1.bf16.msra.mxu0 0
      %521 = vmatprep.subr.bf16.mxu0 0
      %522 = vmatpush1.bf16.msra.mxu0 0
      %523 = vmatprep.subr.bf16.mxu0 0
      %524 = vmatpush1.bf16.msra.mxu0 0
      %525 = vmatprep.subr.bf16.mxu0 0
      %526 = vmatpush1.bf16.msra.mxu0 0
      %527 = vmatprep.mubr.bf16.mxu0 0
      %528 = vmatmul.mubr.bf16.gmra.mrb[0].mxu0 %v430
      %v529 = vpop.f32.mrb[0].mxu0
      %v530 = vadd.f32 0.0, %v529
      %v531 = vpop.f32.mrb[0].mxu0
      %v532 = vpop.f32.mrb[0].mxu0
      %v533 = vpop.f32.mrb[0].mxu0
      %534 = vdwg.mxu0
      %v535 = vrot.slane %v530, 4
      %v536 = vadd.f32 %v530, %v535
      %v537 = vrot.slane %v536, 2
      %v538 = vadd.f32 %v536, %v537
      %v539 = vrot.slane %v538, 1
      %v540 = vadd.f32 %v538, %v539
      %v541 = vrcp.pop 8.0
      %v542 = vmul.f32 %v540, %v541
      %v543 = vsub.f32 %v530, %v542
      %v544 = vmul.f32 %v543, %v543
      %v545 = vrot.slane %v544, 4
      %v546 = vadd.f32 %v544, %v545
      %v547 = vrot.slane %v546, 2
      %v548 = vadd.f32 %v546, %v547
      %v549 = vrot.slane %v548, 1
      %v550 = vadd.f32 %v548, %v549
      %v551 = vmul.f32 %v550, %v541
      %v552 = vadd.f32 %v551, 1e-05
      %v553 = vrsqrt.pop %v552
      %v554 = vmul.f32 %v543, %v553
      %v555 = vlaneseq
      %v556 = vshrl.u32 %v555, 7
      %v557 = vsub.s32 1, %v556
      %v558 = vrot.slane %v380, %v557
      %v559 = vmul.f32 %v554, %v558
      %v560 = vlaneseq
      %v561 = vshrl.u32 %v560, 7
      %v562 = vsub.s32 2, %v561
      %v563 = vrot.slane %v380, %v562
      %v564 = vadd.f32 %v559, %v563
      %v565 = vmax.f32 %v564, 0.0
      %v566 = vpack.c.bf16 %v565, %v565
      %v567 = vld [vmem:[%s361] sm:$0xf]
      %v568 = vld [vmem:[%s361 + $0x4] sm:$0xf]
      %v569 = vld [vmem:[%s361 + $0x8] sm:$0xf]
      %v570 = vld [vmem:[%s361 + $0xc] sm:$0xf]
      %v571 = vld [vmem:[%s361 + $0x10] sm:$0xf]
      %v572 = vld [vmem:[%s361 + $0x14] sm:$0xf]
      %v573 = vld [vmem:[%s361 + $0x18] sm:$0xf]
      %v574 = vld [vmem:[%s361 + $0x1c] sm:$0xf]
      %v575 = vld [vmem:[%s361 + $0x20] sm:$0xf]
      %v576 = vld [vmem:[%s361 + $0x24] sm:$0xf]
      %v577 = vld [vmem:[%s361 + $0x28] sm:$0xf]
      %v578 = vld [vmem:[%s361 + $0x2c] sm:$0xf]
      %v579 = vld [vmem:[%s361 + $0x30] sm:$0xf]
      %v580 = vld [vmem:[%s361 + $0x34] sm:$0xf]
      %v581 = vld [vmem:[%s361 + $0x38] sm:$0xf]
      %v582 = vld [vmem:[%s361 + $0x3c] sm:$0xf]
      %v599 = vunpack.c.l.b16 %v567
      %v600 = vunpack.c.l.b16 %v568
      %v601 = vunpack.c.l.b16 %v569
      %v602 = vunpack.c.l.b16 %v570
      %v603 = vunpack.c.l.b16 %v571
      %v604 = vunpack.c.l.b16 %v572
      %v605 = vunpack.c.l.b16 %v573
      %v606 = vunpack.c.l.b16 %v574
      %v607 = vunpack.c.l.b16 %v575
      %v608 = vunpack.c.l.b16 %v576
      %v609 = vunpack.c.l.b16 %v577
      %v610 = vunpack.c.l.b16 %v578
      %v611 = vunpack.c.l.b16 %v579
      %v612 = vunpack.c.l.b16 %v580
      %v613 = vunpack.c.l.b16 %v581
      %v614 = vunpack.c.l.b16 %v582
      %v615 = vpack.c.b16 %v600, %v599
      %v616 = vpack.c.b16 %v602, %v601
      %v617 = vpack.c.b16 %v604, %v603
      %v618 = vpack.c.b16 %v606, %v605
      %v619 = vpack.c.b16 %v608, %v607
      %v620 = vpack.c.b16 %v610, %v609
      %v621 = vpack.c.b16 %v612, %v611
      %v622 = vpack.c.b16 %v614, %v613
      %631 = vmatprep.subr.bf16.mxu0 0
      %632 = vmatpush1.bf16.msra.mxu0 %v615
      %633 = vmatprep.subr.bf16.mxu0 0
      %634 = vmatpush1.bf16.msra.mxu0 %v616
      %635 = vmatprep.subr.bf16.mxu0 0
      %636 = vmatpush1.bf16.msra.mxu0 %v617
      %637 = vmatprep.subr.bf16.mxu0 0
      %638 = vmatpush1.bf16.msra.mxu0 %v618
      %639 = vmatprep.subr.bf16.mxu0 0
      %640 = vmatpush1.bf16.msra.mxu0 %v619
      %641 = vmatprep.subr.bf16.mxu0 0
      %642 = vmatpush1.bf16.msra.mxu0 %v620
      %643 = vmatprep.subr.bf16.mxu0 0
      %644 = vmatpush1.bf16.msra.mxu0 %v621
      %645 = vmatprep.subr.bf16.mxu0 0
      %646 = vmatpush1.bf16.msra.mxu0 %v622
      %647 = vmatprep.subr.bf16.mxu0 0
      %648 = vmatpush1.bf16.msra.mxu0 0
      %649 = vmatprep.subr.bf16.mxu0 0
      %650 = vmatpush1.bf16.msra.mxu0 0
      %651 = vmatprep.subr.bf16.mxu0 0
      %652 = vmatpush1.bf16.msra.mxu0 0
      %653 = vmatprep.subr.bf16.mxu0 0
      %654 = vmatpush1.bf16.msra.mxu0 0
      %655 = vmatprep.subr.bf16.mxu0 0
      %656 = vmatpush1.bf16.msra.mxu0 0
      %657 = vmatprep.subr.bf16.mxu0 0
      %658 = vmatpush1.bf16.msra.mxu0 0
      %659 = vmatprep.subr.bf16.mxu0 0
      %660 = vmatpush1.bf16.msra.mxu0 0
      %661 = vmatprep.subr.bf16.mxu0 0
      %662 = vmatpush1.bf16.msra.mxu0 0
      %663 = vmatprep.mubr.bf16.mxu0 0
      %664 = vmatmul.mubr.bf16.gmra.mrb[0].mxu0 %v566
      %v665 = vpop.f32.mrb[0].mxu0
      %v666 = vadd.f32 0.0, %v665
      %v667 = vpop.f32.mrb[0].mxu0
      %v668 = vpop.f32.mrb[0].mxu0
      %v669 = vpop.f32.mrb[0].mxu0
      %670 = vdwg.mxu0
      %v671 = vrot.slane %v666, 4
      %v672 = vadd.f32 %v666, %v671
      %v673 = vrot.slane %v672, 2
      %v674 = vadd.f32 %v672, %v673
      %v675 = vrot.slane %v674, 1
      %v676 = vadd.f32 %v674, %v675
      %v677 = vmul.f32 %v676, %v541
      %v678 = vsub.f32 %v666, %v677
      %v679 = vmul.f32 %v678, %v678
      %v680 = vrot.slane %v679, 4
      %v681 = vadd.f32 %v679, %v680
      %v682 = vrot.slane %v681, 2
      %v683 = vadd.f32 %v681, %v682
      %v684 = vrot.slane %v683, 1
      %v685 = vadd.f32 %v683, %v684
      %v686 = vmul.f32 %v685, %v541
      %v687 = vadd.f32 %v686, 1e-05
      %v688 = vrsqrt.pop %v687
      %v689 = vmul.f32 %v678, %v688
      %v690 = vlaneseq
      %v691 = vshrl.u32 %v690, 7
      %v692 = vsub.s32 3, %v691
      %v693 = vrot.slane %v380, %v692
      %v694 = vmul.f32 %v689, %v693
      %v695 = vlaneseq
      %v696 = vshrl.u32 %v695, 7
      %v697 = vsub.s32 4, %v696
      %v698 = vrot.slane %v380, %v697
      %v699 = vadd.f32 %v694, %v698
      %v700 = vmax.f32 %v699, 0.0
      %v701 = vpack.c.bf16 %v700, %v700
      %v702 = vld [vmem:[%s366] sm:$0xf]
      %v703 = vld [vmem:[%s366 + $0x4] sm:$0xf]
      %v704 = vld [vmem:[%s366 + $0x8] sm:$0xf]
      %v705 = vld [vmem:[%s366 + $0xc] sm:$0xf]
      %v706 = vld [vmem:[%s366 + $0x10] sm:$0xf]
      %v707 = vld [vmem:[%s366 + $0x14] sm:$0xf]
      %v708 = vld [vmem:[%s366 + $0x18] sm:$0xf]
      %v709 = vld [vmem:[%s366 + $0x1c] sm:$0xf]
      %v710 = vld [vmem:[%s366 + $0x20] sm:$0xf]
      %v711 = vld [vmem:[%s366 + $0x24] sm:$0xf]
      %v712 = vld [vmem:[%s366 + $0x28] sm:$0xf]
      %v713 = vld [vmem:[%s366 + $0x2c] sm:$0xf]
      %v714 = vld [vmem:[%s366 + $0x30] sm:$0xf]
      %v715 = vld [vmem:[%s366 + $0x34] sm:$0xf]
      %v716 = vld [vmem:[%s366 + $0x38] sm:$0xf]
      %v717 = vld [vmem:[%s366 + $0x3c] sm:$0xf]
      %v734 = vunpack.c.l.b16 %v702
      %v735 = vunpack.c.l.b16 %v703
      %v736 = vunpack.c.l.b16 %v704
      %v737 = vunpack.c.l.b16 %v705
      %v738 = vunpack.c.l.b16 %v706
      %v739 = vunpack.c.l.b16 %v707
      %v740 = vunpack.c.l.b16 %v708
      %v741 = vunpack.c.l.b16 %v709
      %v742 = vunpack.c.l.b16 %v710
      %v743 = vunpack.c.l.b16 %v711
      %v744 = vunpack.c.l.b16 %v712
      %v745 = vunpack.c.l.b16 %v713
      %v746 = vunpack.c.l.b16 %v714
      %v747 = vunpack.c.l.b16 %v715
      %v748 = vunpack.c.l.b16 %v716
      %v749 = vunpack.c.l.b16 %v717
      %v750 = vpack.c.b16 %v735, %v734
      %v751 = vpack.c.b16 %v737, %v736
      %v752 = vpack.c.b16 %v739, %v738
      %v753 = vpack.c.b16 %v741, %v740
      %v754 = vpack.c.b16 %v743, %v742
      %v755 = vpack.c.b16 %v745, %v744
      %v756 = vpack.c.b16 %v747, %v746
      %v757 = vpack.c.b16 %v749, %v748
      %766 = vmatprep.subr.bf16.mxu0 0
      %767 = vmatpush1.bf16.msra.mxu0 %v750
      %768 = vmatprep.subr.bf16.mxu0 0
      %769 = vmatpush1.bf16.msra.mxu0 %v751
      %770 = vmatprep.subr.bf16.mxu0 0
      %771 = vmatpush1.bf16.msra.mxu0 %v752
      %772 = vmatprep.subr.bf16.mxu0 0
      %773 = vmatpush1.bf16.msra.mxu0 %v753
      %774 = vmatprep.subr.bf16.mxu0 0
      %775 = vmatpush1.bf16.msra.mxu0 %v754
      %776 = vmatprep.subr.bf16.mxu0 0
      %777 = vmatpush1.bf16.msra.mxu0 %v755
      %778 = vmatprep.subr.bf16.mxu0 0
      %779 = vmatpush1.bf16.msra.mxu0 %v756
      %780 = vmatprep.subr.bf16.mxu0 0
      %781 = vmatpush1.bf16.msra.mxu0 %v757
      %782 = vmatprep.subr.bf16.mxu0 0
      %783 = vmatpush1.bf16.msra.mxu0 0
      %784 = vmatprep.subr.bf16.mxu0 0
      %785 = vmatpush1.bf16.msra.mxu0 0
      %786 = vmatprep.subr.bf16.mxu0 0
      %787 = vmatpush1.bf16.msra.mxu0 0
      %788 = vmatprep.subr.bf16.mxu0 0
      %789 = vmatpush1.bf16.msra.mxu0 0
      %790 = vmatprep.subr.bf16.mxu0 0
      %791 = vmatpush1.bf16.msra.mxu0 0
      %792 = vmatprep.subr.bf16.mxu0 0
      %793 = vmatpush1.bf16.msra.mxu0 0
      %794 = vmatprep.subr.bf16.mxu0 0
      %795 = vmatpush1.bf16.msra.mxu0 0
      %796 = vmatprep.subr.bf16.mxu0 0
      %797 = vmatpush1.bf16.msra.mxu0 0
      %798 = vmatprep.mubr.bf16.mxu0 0
      %799 = vmatmul.mubr.bf16.gmra.mrb[0].mxu0 %v701
      %v800 = vpop.f32.mrb[0].mxu0
      %v801 = vadd.f32 0.0, %v800
      %v802 = vpop.f32.mrb[0].mxu0
      %v803 = vpop.f32.mrb[0].mxu0
      %v804 = vpop.f32.mrb[0].mxu0
      %805 = vdwg.mxu0
      %v806 = vrot.slane %v801, 4
      %v807 = vadd.f32 %v801, %v806
      %v808 = vrot.slane %v807, 2
      %v809 = vadd.f32 %v807, %v808
      %v810 = vrot.slane %v809, 1
      %v811 = vadd.f32 %v809, %v810
      %v812 = vmul.f32 %v811, %v541
      %v813 = vsub.f32 %v801, %v812
      %v814 = vmul.f32 %v813, %v813
      %v815 = vrot.slane %v814, 4
      %v816 = vadd.f32 %v814, %v815
      %v817 = vrot.slane %v816, 2
      %v818 = vadd.f32 %v816, %v817
      %v819 = vrot.slane %v818, 1
      %v820 = vadd.f32 %v818, %v819
      %v821 = vmul.f32 %v820, %v541
      %v822 = vadd.f32 %v821, 1e-05
      %v823 = vrsqrt.pop %v822
      %v824 = vmul.f32 %v813, %v823
      %v825 = vlaneseq
      %v826 = vshrl.u32 %v825, 7
      %v827 = vsub.s32 5, %v826
      %v828 = vrot.slane %v380, %v827
      %v829 = vmul.f32 %v824, %v828
      %v830 = vlaneseq
      %v831 = vshrl.u32 %v830, 7
      %v832 = vsub.s32 6, %v831
      %v833 = vrot.slane %v380, %v832
      %v834 = vadd.f32 %v829, %v833
      %835 = vst [vmem:[%s374] sm:$0xff] %v834
      %p836 = scmp.lt.s32.totalorder %s19, 1
      %s837 = scalar_select %p836, %s19, 1
      %s838 = smul.addr %s837, 8
      %s839 = scalar_lea.vmem %s6, %s838
      %p840 = scmp.lt.s32.totalorder %s19, 1
      %s841 = scalar_select %p840, %s19, 1
      %s842 = smul.addr %s841, 8
      %s843 = scalar_lea.vmem %s7, %s842
      // Predicated region
      $region45: #{simsiam_forward.1} parent=43 // pred_check
        %p844 = pneg %p193
      $region46: #{simsiam_forward.1} parent=43 // pred_check_branch
        %846 = sbr.rel (%p844) target = $region48
      $region47: #{simsiam_forward.1} parent=43 // pred_region
        _
      $region48: #{simsiam_forward.1} parent=43 // pred_fallthru
        _
      // Predicated region
      $region49: #{simsiam_forward.1} parent=43 // pred_check
        %p847 = pneg %p219
      $region50: #{simsiam_forward.1} parent=43 // pred_check_branch
        %849 = sbr.rel (%p847) target = $region52
      $region51: #{simsiam_forward.1} parent=43 // pred_region
        _
      $region52: #{simsiam_forward.1} parent=43 // pred_fallthru
        _
    $region44: #{simsiam_forward.1} parent=5 // pred_fallthru
      _
    %p850 = scmp.le.s32.totalorder 2, %s14
    // Predicated region
    $region53: #{simsiam_forward.1} parent=5 // pred_check
      %p851 = pneg %p850
    $region54: #{simsiam_forward.1} parent=5 // pred_check_branch
      %853 = sbr.rel (%p851) target = $region56
    $region55: #{simsiam_forward.1} parent=5 // pred_region
      %s854 = ssub.s32 %s14, 2
      // Predicated region
      $region57: #{simsiam_forward.1} parent=55 // pred_check
        %p855 = pneg %p199
      $region58: #{simsiam_forward.1} parent=55 // pred_check_branch
        %857 = sbr.rel (%p855) target = $region60
      $region59: #{simsiam_forward.1} parent=55 // pred_region
        %p858 = scmp.lt.s32.totalorder %s20, 1
        %s859 = scalar_select %p858, %s20, 1
        %s860 = smul.addr %s859, 8
        %s861 = scalar_lea.vmem %s6, %s860
      $region60: #{simsiam_forward.1} parent=55 // pred_fallthru
        _
      // Predicated region
      $region61: #{simsiam_forward.1} parent=55 // pred_check
        %p862 = pneg %p225
      $region62: #{simsiam_forward.1} parent=55 // pred_check_branch
        %864 = sbr.rel (%p862) target = $region64
      $region63: #{simsiam_forward.1} parent=55 // pred_region
        %p865 = scmp.lt.s32.totalorder %s20, 1
        %s866 = scalar_select %p865, %s20, 1
        %s867 = smul.addr %s866, 8
        %s868 = scalar_lea.vmem %s7, %s867
      $region64: #{simsiam_forward.1} parent=55 // pred_fallthru
        _
    $region56: #{simsiam_forward.1} parent=5 // pred_fallthru
      _
  $region6: #{simsiam_forward.1} parent=0 // loop_footer
    %s18 = sadd.s32 1, %s14
  $region7: #{simsiam_forward.1} parent=0 // loop_footer_branch
    %13 = sbr.rel target = $region3
  $region8: #{simsiam_forward.1} parent=0 // loop_exit
    _

</llo_original>
